<compile_context>
chip_gen: v6e
topology: v6e:2x2x1
jax: 0.10.0
libtpu: 0.0.40
codegen_flags: <defaults>
</compile_context>

<pallas_src>
import math
import functools

import jax
import jax.numpy as jnp
from jax import lax
from jax.experimental import pallas as pl
from jax.experimental.pallas import tpu as pltpu


_NEG_BIG = -1e30                     # large finite mask value (no exp(-inf - -inf) NaN hazard)
_VMEM_LIMIT = 56 * 1024 * 1024       # scoped-VMEM limit: headroom under v7x's 64 MiB physical


def _pick_tile(dim, pref, quantum):
    """Largest divisor of `dim` that is <= `pref` and a multiple of `quantum`.

    Falls back to `dim` itself (a full-extent block is always a legal BlockSpec dim) --
    never to an oversized non-divisor, so weight/activation blocks stay bounded.
    """
    for cand in range(min(pref, dim), 0, -1):
        if dim % cand == 0 and cand % quantum == 0:
            return cand
    return dim


# ----------------------------------------------------------------------------
# Tiled linear kernel:  (tm, K) @ (K, tn) + (1, tn)  -> (tm, tn)
# ----------------------------------------------------------------------------
def _linear_kernel(x_ref, w_ref, b_ref, o_ref):
    acc = jnp.dot(x_ref[...], w_ref[...], preferred_element_type=jnp.float32)
    o_ref[...] = (acc + b_ref[...]).astype(o_ref.dtype)


def _linear(x2d, w, b2d, out_dtype, *, tm_pref=256, tn_pref=512):
    M, K = x2d.shape
    K2, N = w.shape
    assert K == K2 and b2d.shape == (1, N)
    tm = _pick_tile(M, tm_pref, 8)
    tn = _pick_tile(N, tn_pref, 128)
    grid = (M // tm, N // tn)
    # Full-K blocks: for transformer widths (K = C, a few thousand at most) the double-buffered
    # x/w blocks stay far below _VMEM_LIMIT.  Add a K ("arbitrary") axis + f32 accumulator if
    # K ever grows much larger (v7x has only 64 MiB VMEM).
    return pl.pallas_call(
        _linear_kernel,
        out_shape=jax.ShapeDtypeStruct((M, N), out_dtype),
        grid_spec=pltpu.PrefetchScalarGridSpec(
            num_scalar_prefetch=0,
            grid=grid,
            in_specs=[
                pl.BlockSpec((tm, K), lambda i, j: (i, 0)),   # x row-tile (constant over j)
                pl.BlockSpec((K, tn), lambda i, j: (0, j)),   # weight column-tile
                pl.BlockSpec((1, tn), lambda i, j: (0, j)),   # 2-D bias (lane-major broadcast)
            ],
            out_specs=pl.BlockSpec((tm, tn), lambda i, j: (i, j)),
        ),
        compiler_params=pltpu.CompilerParams(
            dimension_semantics=("parallel", "parallel"),
            vmem_limit_bytes=_VMEM_LIMIT),
    )(x2d, w, b2d)


# ----------------------------------------------------------------------------
# Flash-style causal attention kernel.
#   inputs : qi_map/ki_map (n_tri,) int32 scalar-prefetch (triangular schedule)
#            qkv_h (3, B, H, T, D) bf16, passed three times (q/k/v leading index)
#   output : y (B, T, C) bf16  -- already in merged-head layout
#   grid   : (B, H // G, n_tri)  with n_tri = nq*(nq+1)/2  (only causal tiles are visited)
# ----------------------------------------------------------------------------
def _flash_attn_kernel(qi_ref, ki_ref, q_ref, k_ref, v_ref, o_ref,
                       m_scr, l_scr, acc_scr, *, tq, tk, G, D):
    t = pl.program_id(2)
    qi = qi_ref[t]
    ki = ki_ref[t]

    @pl.when(ki == 0)
    def _init():
        m_scr[...] = jnp.full(m_scr.shape, _NEG_BIG, dtype=m_scr.dtype)
        l_scr[...] = jnp.zeros(l_scr.shape, dtype=l_scr.dtype)
        acc_scr[...] = jnp.zeros(acc_scr.shape, dtype=acc_scr.dtype)

    q = q_ref[0, 0]                               # (G, tq, D) bf16 (scale pre-folded into W_q)
    k = k_ref[0, 0]                               # (G, tk, D) bf16
    v = v_ref[0, 0]                               # (G, tk, D) bf16

    # Per-head q @ k^T, batched over the G heads in this block; bf16 operands, f32 accumulation.
    s = lax.dot_general(q, k, (((2,), (2,)), ((0,), (0,))),
                        preferred_element_type=jnp.float32)        # (G, tq, tk) f32

    def _update(scores):
        m_prev = m_scr[...]                                        # (G, tq, 1) f32
        m_new = jnp.maximum(m_prev, jnp.max(scores, axis=-1, keepdims=True))
        alpha = jnp.exp(m_prev - m_new)
        p = jnp.exp(scores - m_new)                                # (G, tq, tk) f32
        l_scr[...] = alpha * l_scr[...] + jnp.sum(p, axis=-1, keepdims=True)
        acc_scr[...] = alpha * acc_scr[...] + lax.dot_general(
            p.astype(v.dtype), v, (((2,), (1,)), ((0,), (0,))),
            preferred_element_type=jnp.float32)                    # (G, tq, D) f32
        m_scr[...] = m_new

    @pl.when(ki < qi)
    def _interior():
        # Strictly below the diagonal: every key position is valid -> zero mask/VPU overhead.
        _update(s)

    @pl.when(ki == qi)
    def _diag_and_finalize():
        # Diagonal tile: static relative mask (no program_id offset adds).  tq == tk.
        rel = (lax.broadcasted_iota(jnp.int32, (tq, tk), 0)
               >= lax.broadcasted_iota(jnp.int32, (tq, tk), 1))
        _update(jnp.where(rel[None, :, :], s, _NEG_BIG))
        # ki == qi is the last kv step for this q row -> normalize and store merged heads.
        inv_l = pl.reciprocal(l_scr[...], approx=True)             # (G, tq, 1)
        for g in range(G):                                         # static unroll
            o_ref[0, :, g * D:(g + 1) * D] = (acc_scr[g] * inv_l[g]).astype(o_ref.dtype)


def _flash_attention(qkv_h, *, tq_pref=256):
    # qkv_h: (3, B, H, T, D) bf16.  tq_pref=256 matches the 2x256^2 MXU on v6e/v7x and is a
    # multiple of the native 128 on v5e; sweep 512 on v6e/v7x if profiling shows step overhead.
    _, B, H, T, D = qkv_h.shape
    C = H * D
    tq = _pick_tile(T, tq_pref, 8)
    tk = tq
    nq = T // tq

    # Head-group size: smallest divisor of H making G*D a multiple of 128 (lane-dense output
    # stores + fewer grid steps).  Fallback G = H -> block width == C == full last dim (legal).
    G = H
    for g in range(1, H + 1):
        if H % g == 0 and (g * D) % 128 == 0:
            G = g
            break
    n_hg = H // G
    GD = G * D

    # Triangular (qi, ki <= qi) schedule: no dead grid steps for the masked upper triangle.
    qi_list, ki_list = [], []
    for qi in range(nq):
        for ki in range(qi + 1):
            qi_list.append(qi)
            ki_list.append(ki)
    qi_map = jnp.asarray(qi_list, dtype=jnp.int32)
    ki_map = jnp.asarray(ki_list, dtype=jnp.int32)
    n_tri = len(qi_list)

    kernel = functools.partial(_flash_attn_kernel, tq=tq, tk=tk, G=G, D=D)

    # Scalar-prefetch refs arrive as trailing positional args to every index_map.
    def q_idx(b, hg, t, qi_r, ki_r):
        return (0, b, hg, qi_r[t], 0)

    def k_idx(b, hg, t, qi_r, ki_r):
        return (1, b, hg, ki_r[t], 0)

    def v_idx(b, hg, t, qi_r, ki_r):
        return (2, b, hg, ki_r[t], 0)

    def o_idx(b, hg, t, qi_r, ki_r):
        # Output block written directly into merged (B, T, C) layout; revisited consecutively
        # within a q row and stored only at the finalize step.
        return (b, qi_r[t], hg)

    return pl.pallas_call(
        kernel,
        out_shape=jax.ShapeDtypeStruct((B, T, C), jnp.bfloat16),
        grid_spec=pltpu.PrefetchScalarGridSpec(
            num_scalar_prefetch=2,
            grid=(B, n_hg, n_tri),
            in_specs=[
                pl.BlockSpec((1, 1, G, tq, D), q_idx),
                # If profiling shows exposed K/V DMA on v6e/v7x, add pipeline_mode=pl.Buffered(3).
                pl.BlockSpec((1, 1, G, tk, D), k_idx),
                pl.BlockSpec((1, 1, G, tk, D), v_idx),
            ],
            out_specs=pl.BlockSpec((1, tq, GD), o_idx),
            scratch_shapes=[
                pltpu.VMEM((G, tq, 1), jnp.float32),   # running max m
                pltpu.VMEM((G, tq, 1), jnp.float32),   # running sum l
                pltpu.VMEM((G, tq, D), jnp.float32),   # running accumulator
            ],
        ),
        compiler_params=pltpu.CompilerParams(
            dimension_semantics=("parallel", "parallel", "arbitrary"),
            vmem_limit_bytes=_VMEM_LIMIT),
    )(qi_map, ki_map, qkv_h, qkv_h, qkv_h)


# ----------------------------------------------------------------------------
# Full module forward.
# ----------------------------------------------------------------------------
def causal_self_attention(x, w_attn, b_attn, w_proj, b_proj, *, n_head,
                          tq_pref=256, lin_tm_pref=256, lin_tn_pref=512):
    """x: (B, T, C) float32; weights in torch nn.Linear layout; returns (B, T, C)."""
    B, T, C = x.shape
    assert C % n_head == 0
    H = n_head
    D = C // H
    scale = 1.0 / math.sqrt(D)

    # Fold the attention scale into the q projection (rows [0:C] of W_attn / b_attn) so no
    # kernel ever multiplies the (tq, tk) score matrix (or even q) by it.
    w_attn_s = w_attn.at[:C, :].multiply(scale)
    b_attn_s = b_attn.at[:C].multiply(scale)

    # bf16 matmul operands (f32 accumulation inside the kernels); weights pre-transposed in the
    # wrapper so the kernels never transpose; biases reshaped to lane-major (1, N).
    x_bf = x.astype(jnp.bfloat16).reshape(B * T, C)
    wqkv_t = w_attn_s.T.astype(jnp.bfloat16)                  # (C, 3C)
    wproj_t = w_proj.T.astype(jnp.bfloat16)                   # (C, C)
    bqkv = b_attn_s.reshape(1, 3 * C).astype(jnp.float32)
    bproj = b_proj.reshape(1, C).astype(jnp.float32)

    # 1) QKV projection (Pallas tiled matmul).
    qkv2d = _linear(x_bf, wqkv_t, bqkv, jnp.bfloat16,
                    tm_pref=lin_tm_pref, tn_pref=lin_tn_pref)  # (B*T, 3C) bf16

    # 2) Head-separated layout for attention (layout plumbing, not compute).
    # TODO(synk): fuse this split/transpose into the QKV kernel's out_specs to save the round trip.
    qkv_h = qkv2d.reshape(B, T, 3, H, D).transpose(2, 0, 3, 1, 4)   # (3, B, H, T, D)

    # 3) Flash-style causal attention; output comes back already head-merged as (B, T, C).
    # TODO(synk): attn_drop is identity (inference mode / p = 0).
    y2d = _flash_attention(qkv_h, tq_pref=tq_pref).reshape(B * T, C)   # free metadata reshape

    # 4) Output projection (no head-merge transpose needed anymore).
    out2d = _linear(y2d, wproj_t, bproj, x.dtype,
                    tm_pref=lin_tm_pref, tn_pref=lin_tn_pref)  # (B*T, C) f32
    # TODO(synk): resid_drop is identity (inference mode / p = 0).
    return out2d.reshape(B, T, C)


# ----------------------------------------------------------------------------
# Pure-JAX reference (matches the PyTorch module, eval mode).
# ----------------------------------------------------------------------------
def _reference(x, w_attn, b_attn, w_proj, b_proj, n_head):
    B, T, C = x.shape
    D = C // n_head
    qkv = x @ w_attn.T + b_attn
    q, k, v = jnp.split(qkv, 3, axis=-1)
    q = q.reshape(B, T, n_head, D).transpose(0, 2, 1, 3)
    k = k.reshape(B, T, n_head, D).transpose(0, 2, 1, 3)
    v = v.reshape(B, T, n_head, D).transpose(0, 2, 1, 3)
    att = (q @ jnp.swapaxes(k, -1, -2)) * (1.0 / math.sqrt(D))
    mask = jnp.tril(jnp.ones((T, T), dtype=bool))
    att = jnp.where(mask[None, None], att, -jnp.inf)
    att = jax.nn.softmax(att, axis=-1)
    y = (att @ v).transpose(0, 2, 1, 3).reshape(B, T, C)
    return y @ w_proj.T + b_proj


if __name__ == "__main__":
    def run_case(B, T, n_embd, n_head, tq_pref, key):
        kx, k1, k2, k3, k4 = jax.random.split(key, 5)
        bound = 1.0 / math.sqrt(n_embd)
        w_attn = jax.random.uniform(k1, (3 * n_embd, n_embd), jnp.float32, -bound, bound)
        b_attn = jax.random.uniform(k2, (3 * n_embd,), jnp.float32, -bound, bound)
        w_proj = jax.random.uniform(k3, (n_embd, n_embd), jnp.float32, -bound, bound)
        b_proj = jax.random.uniform(k4, (n_embd,), jnp.float32, -bound, bound)
        x = jax.random.normal(kx, (B, T, n_embd), jnp.float32)

        y = causal_self_attention(x, w_attn, b_attn, w_proj, b_proj,
                                  n_head=n_head, tq_pref=tq_pref)
        y = jax.block_until_ready(y)
        assert y.shape == (B, T, n_embd) and y.dtype == jnp.float32
        assert bool(jnp.all(jnp.isfinite(y)))

        # Loose tolerance: kernels use bf16 matmul operands with f32 accumulation.
        y_ref = _reference(x, w_attn, b_attn, w_proj, b_proj, n_head)
        err = float(jnp.max(jnp.abs(y - y_ref)))
        assert jnp.allclose(y, y_ref, atol=5e-2, rtol=5e-2), err

    key = jax.random.PRNGKey(0)
    k_a, k_b = jax.random.split(key)
    # Case A: D = 64 -> two heads per attention block (G*D = 128, lane-dense output stores);
    #         tq_pref=16 gives nq=2, exercising the triangular schedule + interior/diag paths.
    run_case(B=2, T=32, n_embd=256, n_head=4, tq_pref=16, key=k_a)
    # Case B: tiny head_dim (D = 8) -> all-heads-per-block fallback (block width == C), plus
    #         the full-dimension fallback inside _pick_tile for the linear kernels.
    run_case(B=2, T=16, n_embd=32, n_head=4, tq_pref=8, key=k_b)

    print("KERNEL_OK")
</pallas_src>

<mosaic_0001>
module attributes {stable_mosaic.version = 11 : i64} {
  func.func @_linear_kernel(%arg0: i32, %arg1: i32, %arg2: memref<64x256xbf16, #tpu.memory_space<vmem>>, %arg3: memref<256x384xbf16, #tpu.memory_space<vmem>>, %arg4: memref<1x384xf32, #tpu.memory_space<vmem>>, %arg5: memref<64x384xbf16, #tpu.memory_space<vmem>>) attributes {dimension_semantics = [#tpu.dimension_semantics<parallel>, #tpu.dimension_semantics<parallel>], iteration_bounds = array<i64: 1, 2>, scalar_prefetch = 0 : i64, scratch_operands = 0 : i64, tpu.core_type = #tpu.core_type<tc>, window_params = [{transform_indices = @transform_0, window_bounds = array<i64: 64, 256>}, {transform_indices = @transform_1, window_bounds = array<i64: 256, 384>}, {transform_indices = @transform_2, window_bounds = array<i64: 1, 384>}, {transform_indices = @transform_3, window_bounds = array<i64: 64, 384>}]} {
    %c0 = arith.constant 0 : index
    %c0_0 = arith.constant 0 : index
    %0 = vector.load %arg2[%c0, %c0_0] : memref<64x256xbf16, #tpu.memory_space<vmem>>, vector<64x256xbf16>
    %c0_1 = arith.constant 0 : index
    %c0_2 = arith.constant 0 : index
    %1 = vector.load %arg3[%c0_1, %c0_2] : memref<256x384xbf16, #tpu.memory_space<vmem>>, vector<256x384xbf16>
    %cst = arith.constant dense<0.000000e+00> : vector<64x384xf32>
    %2 = tpu.matmul %0, %1, %cst {dimension_numbers = #tpu.dot_dimension_numbers<[1], [0], [0], [1], [0, 0, 1, 1], [], []>} : vector<64x256xbf16>, vector<256x384xbf16>, vector<64x384xf32> -> vector<64x384xf32>
    %c0_3 = arith.constant 0 : index
    %c0_4 = arith.constant 0 : index
    %3 = vector.load %arg4[%c0_3, %c0_4] : memref<1x384xf32, #tpu.memory_space<vmem>>, vector<1x384xf32>
    %4 = vector.broadcast %3 : vector<1x384xf32> to vector<64x384xf32>
    %5 = arith.addf %2, %4 : vector<64x384xf32>
    %6 = arith.truncf %5 : vector<64x384xf32> to vector<64x384xbf16>
    %c0_5 = arith.constant 0 : index
    %c0_6 = arith.constant 0 : index
    %7 = vector.load %arg5[%c0_5, %c0_6] : memref<64x384xbf16, #tpu.memory_space<vmem>>, vector<64x384xbf16>
    tpu.vector_store %arg5[%c0_5, %c0_6], %6 {strides = array<i32>} : memref<64x384xbf16, #tpu.memory_space<vmem>>, vector<64x384xbf16>,
    return
  }
  func.func @transform_0(%arg0: i32, %arg1: i32) -> (i32, i32) {
    %c0_i32 = arith.constant 0 : i32
    %c0_i32_0 = arith.constant 0 : i32
    return %arg0, %c0_i32 : i32, i32
  }
  func.func @transform_1(%arg0: i32, %arg1: i32) -> (i32, i32) {
    %c0_i32 = arith.constant 0 : i32
    %c0_i32_0 = arith.constant 0 : i32
    return %c0_i32, %arg1 : i32, i32
  }
  func.func @transform_2(%arg0: i32, %arg1: i32) -> (i32, i32) {
    %c0_i32 = arith.constant 0 : i32
    %c0_i32_0 = arith.constant 0 : i32
    return %c0_i32, %arg1 : i32, i32
  }
  func.func @transform_3(%arg0: i32, %arg1: i32) -> (i32, i32) {
    %c0_i32 = arith.constant 0 : i32
    return %arg0, %arg1 : i32, i32
  }
}

</mosaic_0001>

<llo_original>
// kernel: tpu_custom_call.1
$region0: #{tpu_custom_call.1}
  #allocation0 [shape = 'u32[]', space=smem, size = 0x4, offset = 0x4, fixed_abs, tag = 'smem constant byte address 0x4 - core index']
  #allocation1 [shape = 'u32[144,128]{1,0:T(1,128)}', space=vmem, size = 0x12000, scoped, tag = 'internal scratch']
  %s0 = inlined_call_operand.hbm [shape: bf16[64,256], index: 0, kind: input, shape index: {}]
  %s1 = inlined_call_operand.hbm [shape: bf16[256,768], index: 1, kind: input, shape index: {}]
  %s2 = inlined_call_operand.hbm [shape: f32[1,768], index: 2, kind: input, shape index: {}]
  %s3 = inlined_call_operand.hbm [shape: bf16[64,768], index: 3, kind: output, shape index: {}]
  %s4 = sld [smem:[#allocation0]]
  $region57: #{tpu_custom_call.1} parent=0
    _
  %s6 = ssub.s32 1, %s4
  %s7 = scalar_select 0, %s6, %s4
  $region1: #{tpu_custom_call.1} parent=0
    #allocation2 [shape = 'u8[32768]{0}', space=vmem, size = 0x8000, scoped, tag = 'input window, operand 0, single buffered']
    #allocation3 [shape = 's32[2]{0}', space=sflag, size = 0x8, scoped, tag = 'scoped memory for tpu_custom_call.1']
    #allocation4 [shape = 's32[2]{0}', space=sflag, size = 0x8, scoped, tag = 'scoped memory for tpu_custom_call.1']
    #allocation5 [shape = 'u8[393216]{0}', space=vmem, size = 0x60000, scoped, tag = 'input window, operand 1']
    #allocation6 [shape = 's32[2]{0}', space=sflag, size = 0x8, scoped, tag = 'scoped memory for tpu_custom_call.1']
    #allocation7 [shape = 'u8[3072]{0}', space=vmem, size = 0xc00, scoped, tag = 'input window, operand 2']
    #allocation8 [shape = 'u8[98304]{0}', space=vmem, size = 0x18000, scoped, tag = 'output window, operand 0']
    %8 = vsyncpa [#allocation3], 0
    %9 = vsyncpa [#allocation6], 0
    %s10 = scalar_lea.sflag [#allocation6], 1
    %11 = vsyncpa %s10, 0
    %12 = vsyncpa [#allocation4], 0
    %s13 = scalar_lea.sflag [#allocation4], 1
    %14 = vsyncpa %s13, 0
    loop: start=0, step=1, limit=4
    $region2: #{tpu_custom_call.1} parent=1 // loop_pre_header
      _
    $region3: #{tpu_custom_call.1} parent=1 // loop_header
      %s16 = sphi 0, %s20
      %p17 = scmp.ge.s32.totalorder %s16, 4
      %s23 = sphi 0, %s35
      %s24 = sphi 0, %s31
      %s25 = sphi 0, %s23
      %s26 = sphi 0, %s24
      %s27 = sphi 0, %s25
      %s28 = sphi 0, %s26
      %s38 = sphi 0, %s40
      %s41 = sphi 0, %s38
      %s42 = sphi 0, %s41
      %s58 = sphi 0, %s42
      %s64 = sphi 0, %s66
      %s67 = sphi 0, %s64
      %s68 = sphi 0, %s67
      %s84 = sphi 0, %s68
      %s90 = sphi 0, %s92
      %s93 = sphi 0, %s90
      %s94 = sphi 0, %s93
      %s110 = sphi 0, %s94
      %s118 = sphi 0, %s120
      %s121 = sphi 0, %s118
      %s122 = sphi 0, %s121
      %s138 = sphi 0, %s122
    $region4: #{tpu_custom_call.1} parent=1 // loop_header_branch
      %19 = sbr.rel (%p17) target = $region8
    $region5: #{tpu_custom_call.1} parent=1 // loop_body
      %s21 = ssub.s32 %s16, 1
      %s22 = ssub.s32 %s16, 2
      %s29 = sadd.s32 1, %s24
      %p30 = scmp.ge.s32.totalorder %s29, 2
      %s31 = scalar_select %p30, 0, %s29
      %s32 = sadd.s32 1, %s23
      %s33 = scalar_select %p30, %s32, %s23
      %p34 = scmp.ge.s32.totalorder %s33, 1
      %s35 = scalar_select %p34, 0, %s33
      %s36 = ssub.s32 %s23, %s35
      %p37 = scmp.eq.s32.totalorder %s36, 0
      %s39 = sadd.s32 %s38, 1
      %s40 = scalar_select %p37, %s38, %s39
      %p43 = pneg %p37
      %p44 = scmp.eq.s32.totalorder %s16, 1
      %p45 = por %p43, %p44
      %p46 = scmp.ne.s32.totalorder %s38, %s41
      %p47 = scmp.eq.s32.totalorder %s16, 0
      %p48 = por %p46, %p47
      %p49 = scmp.ne.s32.totalorder %s38, %s41
      %p50 = scmp.eq.s32.totalorder %s21, 1
      %p51 = por %p49, %p50
      %p52 = scmp.ne.s32.totalorder %s41, %s42
      %p53 = scmp.eq.s32.totalorder %s21, 0
      %p54 = por %p52, %p53
      %p55 = scmp.ne.s32.totalorder %s41, %s42
      %p56 = scmp.eq.s32.totalorder %s22, 1
      %p57 = por %p55, %p56
      %p59 = scmp.ne.s32.totalorder %s42, %s58
      %p60 = scmp.eq.s32.totalorder %s22, 0
      %p61 = por %p59, %p60
      %s62 = ssub.s32 %s24, %s31
      %p63 = scmp.eq.s32.totalorder %s62, 0
      %s65 = sadd.s32 %s64, 1
      %s66 = scalar_select %p63, %s64, %s65
      %p69 = pneg %p63
      %p70 = scmp.eq.s32.totalorder %s16, 1
      %p71 = por %p69, %p70
      %p72 = scmp.ne.s32.totalorder %s64, %s67
      %p73 = scmp.eq.s32.totalorder %s16, 0
      %p74 = por %p72, %p73
      %p75 = scmp.ne.s32.totalorder %s64, %s67
      %p76 = scmp.eq.s32.totalorder %s21, 1
      %p77 = por %p75, %p76
      %p78 = scmp.ne.s32.totalorder %s67, %s68
      %p79 = scmp.eq.s32.totalorder %s21, 0
      %p80 = por %p78, %p79
      %p81 = scmp.ne.s32.totalorder %s67, %s68
      %p82 = scmp.eq.s32.totalorder %s22, 1
      %p83 = por %p81, %p82
      %p85 = scmp.ne.s32.totalorder %s68, %s84
      %p86 = scmp.eq.s32.totalorder %s22, 0
      %p87 = por %p85, %p86
      %s88 = ssub.s32 %s24, %s31
      %p89 = scmp.eq.s32.totalorder %s88, 0
      %s91 = sadd.s32 %s90, 1
      %s92 = scalar_select %p89, %s90, %s91
      %p95 = pneg %p89
      %p96 = scmp.eq.s32.totalorder %s16, 1
      %p97 = por %p95, %p96
      %p98 = scmp.ne.s32.totalorder %s90, %s93
      %p99 = scmp.eq.s32.totalorder %s16, 0
      %p100 = por %p98, %p99
      %p101 = scmp.ne.s32.totalorder %s90, %s93
      %p102 = scmp.eq.s32.totalorder %s21, 1
      %p103 = por %p101, %p102
      %p104 = scmp.ne.s32.totalorder %s93, %s94
      %p105 = scmp.eq.s32.totalorder %s21, 0
      %p106 = por %p104, %p105
      %p107 = scmp.ne.s32.totalorder %s93, %s94
      %p108 = scmp.eq.s32.totalorder %s22, 1
      %p109 = por %p107, %p108
      %p111 = scmp.ne.s32.totalorder %s94, %s110
      %p112 = scmp.eq.s32.totalorder %s22, 0
      %p113 = por %p111, %p112
      %s114 = ssub.s32 %s23, %s35
      %s115 = ssub.s32 %s24, %s31
      %s116 = sor.u32 %s114, %s115
      %p117 = scmp.eq.s32.totalorder %s116, 0
      %s119 = sadd.s32 %s118, 1
      %s120 = scalar_select %p117, %s118, %s119
      %p123 = pneg %p117
      %p124 = scmp.eq.s32.totalorder %s16, 1
      %p125 = por %p123, %p124
      %p126 = scmp.ne.s32.totalorder %s118, %s121
      %p127 = scmp.eq.s32.totalorder %s16, 0
      %p128 = por %p126, %p127
      %p129 = scmp.ne.s32.totalorder %s118, %s121
      %p130 = scmp.eq.s32.totalorder %s21, 1
      %p131 = por %p129, %p130
      %p132 = scmp.ne.s32.totalorder %s121, %s122
      %p133 = scmp.eq.s32.totalorder %s21, 0
      %p134 = por %p132, %p133
      %p135 = scmp.ne.s32.totalorder %s121, %s122
      %p136 = scmp.eq.s32.totalorder %s22, 1
      %p137 = por %p135, %p136
      %p139 = scmp.ne.s32.totalorder %s122, %s138
      %p140 = scmp.eq.s32.totalorder %s22, 0
      %p141 = por %p139, %p140
      %p142 = scmp.le.s32.totalorder 1, %s16
      %p143 = scmp.lt.s32.totalorder %s16, 3
      %p144 = pnand %p142, %p143
      %p145 = pneg %p144
      // Predicated region
      $region9: #{tpu_custom_call.1} parent=5 // pred_check
        _
      $region10: #{tpu_custom_call.1} parent=5 // pred_check_branch
        %147 = sbr.rel (%p144) target = $region12
      $region11: #{tpu_custom_call.1} parent=5 // pred_region
        %s148 = ssub.s32 %s16, 1
        // Predicated region
        $region13: #{tpu_custom_call.1} parent=11 // pred_check
          %p149 = pneg %p54
        $region14: #{tpu_custom_call.1} parent=11 // pred_check_branch
          %151 = sbr.rel (%p149) target = $region16
        $region15: #{tpu_custom_call.1} parent=11 // pred_region
          %s152 = smul.u32 8, %s25
          %s154 = ssub.s32 1024, 1024
          %155 = vsyncadd [#allocation3], %s154
          %s156 = smul.addr %s152, 2
          %s157 = smul.addr %s156, 64
          %s158 = scalar_lea.hbm %s0, %s157
          %s159 = sshll.u32 [#allocation2], 4
          %s160 = int_to_ptr.vmem [resolvable:$true] %s159
          %165 = dma.hbm_to_vmem [thread:$0]  %s158, 1024, %s160, [#allocation3], 128, 128, 8
        $region16: #{tpu_custom_call.1} parent=11 // pred_fallthru
          _
      $region12: #{tpu_custom_call.1} parent=5 // pred_fallthru
        _
      %p166 = scmp.lt.s32.totalorder %s16, 2
      // Predicated region
      $region17: #{tpu_custom_call.1} parent=5 // pred_check
        %p167 = pneg %p166
      $region18: #{tpu_custom_call.1} parent=5 // pred_check_branch
        %169 = sbr.rel (%p167) target = $region20
      $region19: #{tpu_custom_call.1} parent=5 // pred_region
        // Predicated region
        $region21: #{tpu_custom_call.1} parent=19 // pred_check
          %p170 = pneg %p74
        $region22: #{tpu_custom_call.1} parent=19 // pred_check_branch
          %172 = sbr.rel (%p170) target = $region24
        $region23: #{tpu_custom_call.1} parent=19 // pred_region
          %s173 = sand.u32 %s16, 1
          %s174 = scalar_lea.sflag [#allocation6], %s173
          %s175 = sand.u32 %s64, 1
          %s176 = smul.addr %s175, 384
          %s177 = scalar_lea.vmem [#allocation5], %s176
          %s178 = smul.u32 3, %s24
          %s180 = ssub.s32 6144, 6144
          %181 = vsyncadd %s174, %s180
          %s182 = smul.addr %s178, 64
          %s183 = scalar_lea.hbm %s1, %s182
          %s184 = sshll.u32 %s177, 4
          %s185 = int_to_ptr.vmem [resolvable:$true] %s184
          %190 = dma.hbm_to_vmem [thread:$0]  %s183, 6144, %s185, %s174, 384, 192, 12
        $region24: #{tpu_custom_call.1} parent=19 // pred_fallthru
          _
        // Predicated region
        $region25: #{tpu_custom_call.1} parent=19 // pred_check
          %p191 = pneg %p100
        $region26: #{tpu_custom_call.1} parent=19 // pred_check_branch
          %193 = sbr.rel (%p191) target = $region28
        $region27: #{tpu_custom_call.1} parent=19 // pred_region
          %s194 = sand.u32 %s16, 1
          %s195 = scalar_lea.sflag [#allocation6], %s194
          %s196 = sand.u32 %s90, 1
          %s197 = smul.addr %s196, 3
          %s198 = scalar_lea.vmem [#allocation7], %s197
          %s199 = smul.u32 3, %s24
          %s201 = ssub.s32 48, 48
          %202 = vsyncadd %s195, %s201
          %s203 = smul.addr %s199, 16
          %s204 = scalar_lea.hbm %s2, %s203
          %s206 = sshll.u32 %s198, 4
          %s207 = int_to_ptr.vmem [resolvable:$true] %s206
          %209 = dma.hbm_to_vmem [thread:$0]  %s204, 48, %s207, %s195
        $region28: #{tpu_custom_call.1} parent=19 // pred_fallthru
          _
      $region20: #{tpu_custom_call.1} parent=5 // pred_fallthru
        _
      %p210 = scmp.le.s32.totalorder 1, %s16
      %p211 = scmp.lt.s32.totalorder %s16, 3
      %p212 = pnand %p210, %p211
      %p213 = pneg %p212
      // Predicated region
      $region29: #{tpu_custom_call.1} parent=5 // pred_check
        _
      $region30: #{tpu_custom_call.1} parent=5 // pred_check_branch
        %215 = sbr.rel (%p212) target = $region32
      $region31: #{tpu_custom_call.1} parent=5 // pred_region
        %s216 = ssub.s32 %s16, 1
        // Predicated region
        $region33: #{tpu_custom_call.1} parent=31 // pred_check
          %p217 = pneg %p54
        $region34: #{tpu_custom_call.1} parent=31 // pred_check_branch
          %219 = sbr.rel (%p217) target = $region36
        $region35: #{tpu_custom_call.1} parent=31 // pred_region
          %220 = dma.done [#allocation3], 1024
        $region36: #{tpu_custom_call.1} parent=31 // pred_fallthru
          _
        %s221 = sand.u32 %s21, 1
        %s222 = scalar_lea.sflag [#allocation6], %s221
        %s223 = sand.u32 %s67, 1
        %s224 = smul.addr %s223, 384
        %s225 = scalar_lea.vmem [#allocation5], %s224
        // Predicated region
        $region37: #{tpu_custom_call.1} parent=31 // pred_check
          %p226 = pneg %p80
        $region38: #{tpu_custom_call.1} parent=31 // pred_check_branch
          %228 = sbr.rel (%p226) target = $region40
        $region39: #{tpu_custom_call.1} parent=31 // pred_region
          %229 = dma.done %s222, 6144
        $region40: #{tpu_custom_call.1} parent=31 // pred_fallthru
          _
        %s230 = sand.u32 %s21, 1
        %s231 = scalar_lea.sflag [#allocation6], %s230
        %s232 = sand.u32 %s93, 1
        %s233 = smul.addr %s232, 3
        %s234 = scalar_lea.vmem [#allocation7], %s233
        // Predicated region
        $region41: #{tpu_custom_call.1} parent=31 // pred_check
          %p235 = pneg %p106
        $region42: #{tpu_custom_call.1} parent=31 // pred_check_branch
          %237 = sbr.rel (%p235) target = $region44
        $region43: #{tpu_custom_call.1} parent=31 // pred_region
          %238 = dma.done %s231, 48
        $region44: #{tpu_custom_call.1} parent=31 // pred_fallthru
          _
        %p239 = pneg %p54
        %p240 = pneg %p51
        %s241 = sand.u32 %s21, 1
        %s242 = scalar_lea.sflag [#allocation6], %s241
        %s243 = sand.u32 %s67, 1
        %s244 = smul.addr %s243, 384
        %s245 = scalar_lea.vmem [#allocation5], %s244
        %p246 = pneg %p80
        %p247 = pneg %p77
        %s248 = sand.u32 %s21, 1
        %s249 = scalar_lea.sflag [#allocation6], %s248
        %s250 = sand.u32 %s93, 1
        %s251 = smul.addr %s250, 3
        %s252 = scalar_lea.vmem [#allocation7], %s251
        %p253 = pneg %p106
        %p254 = pneg %p103
        %p255 = pneg %p134
        %p256 = pneg %p131
        %s257 = sand.u32 %s121, 1
        %s258 = scalar_lea.sflag [#allocation4], %s257
        %s259 = sand.u32 %s121, 1
        %s260 = smul.addr %s259, 96
        %s261 = scalar_lea.vmem [#allocation8], %s260
        %s262 = smul.u32 8, %s25
        %s263 = smul.u32 3, %s26
        %s264 = smul.u32 3, %s26
        %s265 = smul.u32 8, %s25
        %s266 = smul.u32 3, %s26
        %v268 = vld [vmem:[#allocation2] sm:$0xff]
        %v269 = vld [vmem:[#allocation2 + $0x8] sm:$0xff]
        %v270 = vld [vmem:[#allocation2 + $0x10] sm:$0xff]
        %v271 = vld [vmem:[#allocation2 + $0x18] sm:$0xff]
        %v272 = vld [vmem:[#allocation2 + $0x20] sm:$0xff]
        %v273 = vld [vmem:[#allocation2 + $0x28] sm:$0xff]
        %v274 = vld [vmem:[#allocation2 + $0x30] sm:$0xff]
        %v275 = vld [vmem:[#allocation2 + $0x38] sm:$0xff]
        %v276 = vld [vmem:[%s225] sm:$0xff]
        %v277 = vld [vmem:[%s225 + $0x8] sm:$0xf]
        %v278 = vld [vmem:[%s225 + $0xc] sm:$0xff]
        %v279 = vld [vmem:[%s225 + $0x14] sm:$0xf]
        %v280 = vld [vmem:[%s225 + $0x18] sm:$0xff]
        %v281 = vld [vmem:[%s225 + $0x20] sm:$0xf]
        %v282 = vld [vmem:[%s225 + $0x24] sm:$0xff]
        %v283 = vld [vmem:[%s225 + $0x2c] sm:$0xf]
        %v284 = vld [vmem:[%s225 + $0x30] sm:$0xff]
        %v285 = vld [vmem:[%s225 + $0x38] sm:$0xf]
        %v286 = vld [vmem:[%s225 + $0x3c] sm:$0xff]
        %v287 = vld [vmem:[%s225 + $0x44] sm:$0xf]
        %v288 = vld [vmem:[%s225 + $0x48] sm:$0xff]
        %v289 = vld [vmem:[%s225 + $0x50] sm:$0xf]
        %v290 = vld [vmem:[%s225 + $0x54] sm:$0xff]
        %v291 = vld [vmem:[%s225 + $0x5c] sm:$0xf]
        %v292 = vld [vmem:[%s225 + $0x60] sm:$0xff]
        %v293 = vld [vmem:[%s225 + $0x68] sm:$0xf]
        %v294 = vld [vmem:[%s225 + $0x6c] sm:$0xff]
        %v295 = vld [vmem:[%s225 + $0x74] sm:$0xf]
        %v296 = vld [vmem:[%s225 + $0x78] sm:$0xff]
        %v297 = vld [vmem:[%s225 + $0x80] sm:$0xf]
        %v298 = vld [vmem:[%s225 + $0x84] sm:$0xff]
        %v299 = vld [vmem:[%s225 + $0x8c] sm:$0xf]
        %v300 = vld [vmem:[%s225 + $0x90] sm:$0xff]
        %v301 = vld [vmem:[%s225 + $0x98] sm:$0xf]
        %v302 = vld [vmem:[%s225 + $0x9c] sm:$0xff]
        %v303 = vld [vmem:[%s225 + $0xa4] sm:$0xf]
        %v304 = vld [vmem:[%s225 + $0xa8] sm:$0xff]
        %v305 = vld [vmem:[%s225 + $0xb0] sm:$0xf]
        %v306 = vld [vmem:[%s225 + $0xb4] sm:$0xff]
        %v307 = vld [vmem:[%s225 + $0xbc] sm:$0xf]
        %v308 = vld [vmem:[%s225 + $0xc0] sm:$0xff]
        %v309 = vld [vmem:[%s225 + $0xc8] sm:$0xf]
        %v310 = vld [vmem:[%s225 + $0xcc] sm:$0xff]
        %v311 = vld [vmem:[%s225 + $0xd4] sm:$0xf]
        %v312 = vld [vmem:[%s225 + $0xd8] sm:$0xff]
        %v313 = vld [vmem:[%s225 + $0xe0] sm:$0xf]
        %v314 = vld [vmem:[%s225 + $0xe4] sm:$0xff]
        %v315 = vld [vmem:[%s225 + $0xec] sm:$0xf]
        %v316 = vld [vmem:[%s225 + $0xf0] sm:$0xff]
        %v317 = vld [vmem:[%s225 + $0xf8] sm:$0xf]
        %v318 = vld [vmem:[%s225 + $0xfc] sm:$0xff]
        %v319 = vld [vmem:[%s225 + $0x104] sm:$0xf]
        %v320 = vld [vmem:[%s225 + $0x108] sm:$0xff]
        %v321 = vld [vmem:[%s225 + $0x110] sm:$0xf]
        %v322 = vld [vmem:[%s225 + $0x114] sm:$0xff]
        %v323 = vld [vmem:[%s225 + $0x11c] sm:$0xf]
        %v324 = vld [vmem:[%s225 + $0x120] sm:$0xff]
        %v325 = vld [vmem:[%s225 + $0x128] sm:$0xf]
        %v326 = vld [vmem:[%s225 + $0x12c] sm:$0xff]
        %v327 = vld [vmem:[%s225 + $0x134] sm:$0xf]
        %v328 = vld [vmem:[%s225 + $0x138] sm:$0xff]
        %v329 = vld [vmem:[%s225 + $0x140] sm:$0xf]
        %v330 = vld [vmem:[%s225 + $0x144] sm:$0xff]
        %v331 = vld [vmem:[%s225 + $0x14c] sm:$0xf]
        %v332 = vld [vmem:[%s225 + $0x150] sm:$0xff]
        %v333 = vld [vmem:[%s225 + $0x158] sm:$0xf]
        %v334 = vld [vmem:[%s225 + $0x15c] sm:$0xff]
        %v335 = vld [vmem:[%s225 + $0x164] sm:$0xf]
        %v336 = vld [vmem:[%s225 + $0x168] sm:$0xff]
        %v337 = vld [vmem:[%s225 + $0x170] sm:$0xf]
        %v338 = vld [vmem:[%s225 + $0x174] sm:$0xff]
        %v339 = vld [vmem:[%s225 + $0x17c] sm:$0xf]
        %v340 = vld [vmem:[%s234] sm:$0x7]
        %v342 = vlaneseq
        %v343 = vshrl.u32 %v342, 7
        %v344 = vsub.s32 0, %v343
        %v345 = vrot.slane %v340, %v344
        %v346 = vlaneseq
        %v347 = vshrl.u32 %v346, 7
        %v348 = vsub.s32 1, %v347
        %v349 = vrot.slane %v340, %v348
        %v350 = vlaneseq
        %v351 = vshrl.u32 %v350, 7
        %v352 = vsub.s32 2, %v351
        %v353 = vrot.slane %v340, %v352
        %v365 = vunpack.c.l.b16 %v268
        %v366 = vunpack.c.h.b16 %v268
        %v367 = vunpack.c.l.b16 %v269
        %v368 = vunpack.c.h.b16 %v269
        %v369 = vunpack.c.l.b16 %v270
        %v370 = vunpack.c.h.b16 %v270
        %v371 = vunpack.c.l.b16 %v271
        %v372 = vunpack.c.h.b16 %v271
        %v373 = vunpack.c.l.b16 %v272
        %v374 = vunpack.c.h.b16 %v272
        %v375 = vunpack.c.l.b16 %v273
        %v376 = vunpack.c.h.b16 %v273
        %v377 = vunpack.c.l.b16 %v274
        %v378 = vunpack.c.h.b16 %v274
        %v379 = vunpack.c.l.b16 %v275
        %v380 = vunpack.c.h.b16 %v275
        %v381 = vpack.c.b16 %v367, %v365
        %v382 = vpack.c.b16 %v368, %v366
        %v383 = vpack.c.b16 %v371, %v369
        %v384 = vpack.c.b16 %v372, %v370
        %v385 = vpack.c.b16 %v375, %v373
        %v386 = vpack.c.b16 %v376, %v374
        %v387 = vpack.c.b16 %v379, %v377
        %v388 = vpack.c.b16 %v380, %v378
        %v461 = vunpack.c.l.b16 %v276
        %v462 = vunpack.c.h.b16 %v276
        %v463 = vunpack.c.l.b16 %v277
        %v464 = vunpack.c.l.b16 %v278
        %v465 = vunpack.c.h.b16 %v278
        %v466 = vunpack.c.l.b16 %v279
        %v467 = vunpack.c.l.b16 %v280
        %v468 = vunpack.c.h.b16 %v280
        %v469 = vunpack.c.l.b16 %v281
        %v470 = vunpack.c.l.b16 %v282
        %v471 = vunpack.c.h.b16 %v282
        %v472 = vunpack.c.l.b16 %v283
        %v473 = vunpack.c.l.b16 %v284
        %v474 = vunpack.c.h.b16 %v284
        %v475 = vunpack.c.l.b16 %v285
        %v476 = vunpack.c.l.b16 %v286
        %v477 = vunpack.c.h.b16 %v286
        %v478 = vunpack.c.l.b16 %v287
        %v479 = vunpack.c.l.b16 %v288
        %v480 = vunpack.c.h.b16 %v288
        %v481 = vunpack.c.l.b16 %v289
        %v482 = vunpack.c.l.b16 %v290
        %v483 = vunpack.c.h.b16 %v290
        %v484 = vunpack.c.l.b16 %v291
        %v485 = vunpack.c.l.b16 %v292
        %v486 = vunpack.c.h.b16 %v292
        %v487 = vunpack.c.l.b16 %v293
        %v488 = vunpack.c.l.b16 %v294
        %v489 = vunpack.c.h.b16 %v294
        %v490 = vunpack.c.l.b16 %v295
        %v491 = vunpack.c.l.b16 %v296
        %v492 = vunpack.c.h.b16 %v296
        %v493 = vunpack.c.l.b16 %v297
        %v494 = vunpack.c.l.b16 %v298
        %v495 = vunpack.c.h.b16 %v298
        %v496 = vunpack.c.l.b16 %v299
        %v497 = vunpack.c.l.b16 %v300
        %v498 = vunpack.c.h.b16 %v300
        %v499 = vunpack.c.l.b16 %v301
        %v500 = vunpack.c.l.b16 %v302
        %v501 = vunpack.c.h.b16 %v302
        %v502 = vunpack.c.l.b16 %v303
        %v503 = vunpack.c.l.b16 %v304
        %v504 = vunpack.c.h.b16 %v304
        %v505 = vunpack.c.l.b16 %v305
        %v506 = vunpack.c.l.b16 %v306
        %v507 = vunpack.c.h.b16 %v306
        %v508 = vunpack.c.l.b16 %v307
        %v509 = vunpack.c.l.b16 %v308
        %v510 = vunpack.c.h.b16 %v308
        %v511 = vunpack.c.l.b16 %v309
        %v512 = vunpack.c.l.b16 %v310
        %v513 = vunpack.c.h.b16 %v310
        %v514 = vunpack.c.l.b16 %v311
        %v515 = vunpack.c.l.b16 %v312
        %v516 = vunpack.c.h.b16 %v312
        %v517 = vunpack.c.l.b16 %v313
        %v518 = vunpack.c.l.b16 %v314
        %v519 = vunpack.c.h.b16 %v314
        %v520 = vunpack.c.l.b16 %v315
        %v521 = vunpack.c.l.b16 %v316
        %v522 = vunpack.c.h.b16 %v316
        %v523 = vunpack.c.l.b16 %v317
        %v524 = vunpack.c.l.b16 %v318
        %v525 = vunpack.c.h.b16 %v318
        %v526 = vunpack.c.l.b16 %v319
        %v527 = vunpack.c.l.b16 %v320
        %v528 = vunpack.c.h.b16 %v320
        %v529 = vunpack.c.l.b16 %v321
        %v530 = vunpack.c.l.b16 %v322
        %v531 = vunpack.c.h.b16 %v322
        %v532 = vunpack.c.l.b16 %v323
        %v533 = vunpack.c.l.b16 %v324
        %v534 = vunpack.c.h.b16 %v324
        %v535 = vunpack.c.l.b16 %v325
        %v536 = vunpack.c.l.b16 %v326
        %v537 = vunpack.c.h.b16 %v326
        %v538 = vunpack.c.l.b16 %v327
        %v539 = vunpack.c.l.b16 %v328
        %v540 = vunpack.c.h.b16 %v328
        %v541 = vunpack.c.l.b16 %v329
        %v542 = vunpack.c.l.b16 %v330
        %v543 = vunpack.c.h.b16 %v330
        %v544 = vunpack.c.l.b16 %v331
        %v545 = vunpack.c.l.b16 %v332
        %v546 = vunpack.c.h.b16 %v332
        %v547 = vunpack.c.l.b16 %v333
        %v548 = vunpack.c.l.b16 %v334
        %v549 = vunpack.c.h.b16 %v334
        %v550 = vunpack.c.l.b16 %v335
        %v551 = vunpack.c.l.b16 %v336
        %v552 = vunpack.c.h.b16 %v336
        %v553 = vunpack.c.l.b16 %v337
        %v554 = vunpack.c.l.b16 %v338
        %v555 = vunpack.c.h.b16 %v338
        %v556 = vunpack.c.l.b16 %v339
        %v557 = vpack.c.b16 %v464, %v461
        %v558 = vpack.c.b16 %v465, %v462
        %v559 = vpack.c.b16 %v466, %v463
        %v560 = vpack.c.b16 %v470, %v467
        %v561 = vpack.c.b16 %v471, %v468
        %v562 = vpack.c.b16 %v472, %v469
        %v563 = vpack.c.b16 %v476, %v473
        %v564 = vpack.c.b16 %v477, %v474
        %v565 = vpack.c.b16 %v478, %v475
        %v566 = vpack.c.b16 %v482, %v479
        %v567 = vpack.c.b16 %v483, %v480
        %v568 = vpack.c.b16 %v484, %v481
        %v569 = vpack.c.b16 %v488, %v485
        %v570 = vpack.c.b16 %v489, %v486
        %v571 = vpack.c.b16 %v490, %v487
        %v572 = vpack.c.b16 %v494, %v491
        %v573 = vpack.c.b16 %v495, %v492
        %v574 = vpack.c.b16 %v496, %v493
        %v575 = vpack.c.b16 %v500, %v497
        %v576 = vpack.c.b16 %v501, %v498
        %v577 = vpack.c.b16 %v502, %v499
        %v578 = vpack.c.b16 %v506, %v503
        %v579 = vpack.c.b16 %v507, %v504
        %v580 = vpack.c.b16 %v508, %v505
        %v581 = vpack.c.b16 %v512, %v509
        %v582 = vpack.c.b16 %v513, %v510
        %v583 = vpack.c.b16 %v514, %v511
        %v584 = vpack.c.b16 %v518, %v515
        %v585 = vpack.c.b16 %v519, %v516
        %v586 = vpack.c.b16 %v520, %v517
        %v587 = vpack.c.b16 %v524, %v521
        %v588 = vpack.c.b16 %v525, %v522
        %v589 = vpack.c.b16 %v526, %v523
        %v590 = vpack.c.b16 %v530, %v527
        %v591 = vpack.c.b16 %v531, %v528
        %v592 = vpack.c.b16 %v532, %v529
        %v593 = vpack.c.b16 %v536, %v533
        %v594 = vpack.c.b16 %v537, %v534
        %v595 = vpack.c.b16 %v538, %v535
        %v596 = vpack.c.b16 %v542, %v539
        %v597 = vpack.c.b16 %v543, %v540
        %v598 = vpack.c.b16 %v544, %v541
        %v599 = vpack.c.b16 %v548, %v545
        %v600 = vpack.c.b16 %v549, %v546
        %v601 = vpack.c.b16 %v550, %v547
        %v602 = vpack.c.b16 %v554, %v551
        %v603 = vpack.c.b16 %v555, %v552
        %v604 = vpack.c.b16 %v556, %v553
        %653 = vmatprep.subr.bf16.mxu0 %v579
        %654 = vmatpush1.bf16.msra.mxu0 %v578
        %655 = vmatprep.subr.bf16.mxu0 %v576
        %656 = vmatpush1.bf16.msra.mxu0 %v575
        %657 = vmatprep.subr.bf16.mxu0 %v573
        %658 = vmatpush1.bf16.msra.mxu0 %v572
        %659 = vmatprep.subr.bf16.mxu0 %v570
        %660 = vmatpush1.bf16.msra.mxu0 %v569
        %661 = vmatprep.subr.bf16.mxu0 %v567
        %662 = vmatpush1.bf16.msra.mxu0 %v566
        %663 = vmatprep.subr.bf16.mxu0 %v564
        %664 = vmatpush1.bf16.msra.mxu0 %v563
        %665 = vmatprep.subr.bf16.mxu0 %v561
        %666 = vmatpush1.bf16.msra.mxu0 %v560
        %667 = vmatprep.subr.bf16.mxu0 %v558
        %668 = vmatpush1.bf16.msra.mxu0 %v557
        %669 = vmatprep.subr.bf16.mxu0 %v603
        %670 = vmatpush2.bf16.msra.mxu0 %v602
        %671 = vmatprep.subr.bf16.mxu0 %v600
        %672 = vmatpush2.bf16.msra.mxu0 %v599
        %673 = vmatprep.subr.bf16.mxu0 %v597
        %674 = vmatpush2.bf16.msra.mxu0 %v596
        %675 = vmatprep.subr.bf16.mxu0 %v594
        %676 = vmatpush2.bf16.msra.mxu0 %v593
        %677 = vmatprep.subr.bf16.mxu0 %v591
        %678 = vmatpush2.bf16.msra.mxu0 %v590
        %679 = vmatprep.subr.bf16.mxu0 %v588
        %680 = vmatpush2.bf16.msra.mxu0 %v587
        %681 = vmatprep.subr.bf16.mxu0 %v585
        %682 = vmatpush2.bf16.msra.mxu0 %v584
        %683 = vmatprep.subr.bf16.mxu0 %v582
        %684 = vmatpush2.bf16.msra.mxu0 %v581
        %685 = vmatprep.mubr.bf16.mxu0 %v382
        %686 = vmatmul.mubr.bf16.gmra.mxu0 %v381
        %v687 = vpop.f32.mrf.mxu0
        %v688 = vadd.f32 %v345, %v687
        %v689 = vpop.f32.mrf.mxu0
        %v690 = vadd.f32 %v349, %v689
        %v691 = vpop.f32.mrf.mxu0
        %v692 = vadd.f32 %v345, %v691
        %v693 = vpop.f32.mrf.mxu0
        %v694 = vadd.f32 %v349, %v693
        %695 = vmatprep.mubr.bf16.mxu0 %v384
        %696 = vmatmul.mubr.bf16.gmra.mxu0 %v383
        %v697 = vpop.f32.mrf.mxu0
        %v698 = vadd.f32 %v345, %v697
        %v699 = vpop.f32.mrf.mxu0
        %v700 = vadd.f32 %v349, %v699
        %v701 = vpop.f32.mrf.mxu0
        %v702 = vadd.f32 %v345, %v701
        %v703 = vpop.f32.mrf.mxu0
        %v704 = vadd.f32 %v349, %v703
        %705 = vmatprep.mubr.bf16.mxu0 %v386
        %706 = vmatmul.mubr.bf16.gmra.mxu0 %v385
        %v707 = vpop.f32.mrf.mxu0
        %v708 = vadd.f32 %v345, %v707
        %v709 = vpop.f32.mrf.mxu0
        %v710 = vadd.f32 %v349, %v709
        %v711 = vpop.f32.mrf.mxu0
        %v712 = vadd.f32 %v345, %v711
        %v713 = vpop.f32.mrf.mxu0
        %v714 = vadd.f32 %v349, %v713
        %715 = vmatprep.mubr.bf16.mxu0 %v388
        %716 = vmatmul.mubr.bf16.gmra.mxu0 %v387
        %v717 = vpop.f32.mrf.mxu0
        %v718 = vadd.f32 %v345, %v717
        %v719 = vpop.f32.mrf.mxu0
        %v720 = vadd.f32 %v349, %v719
        %v721 = vpop.f32.mrf.mxu0
        %v722 = vadd.f32 %v345, %v721
        %v723 = vpop.f32.mrf.mxu0
        %v724 = vadd.f32 %v349, %v723
        %725 = vdwg.mxu0
        %726 = vmatprep.subr.bf16.mxu0 0
        %727 = vmatpush1.bf16.msra.mxu0 %v580
        %728 = vmatprep.subr.bf16.mxu0 0
        %729 = vmatpush1.bf16.msra.mxu0 %v577
        %730 = vmatprep.subr.bf16.mxu0 0
        %731 = vmatpush1.bf16.msra.mxu0 %v574
        %732 = vmatprep.subr.bf16.mxu0 0
        %733 = vmatpush1.bf16.msra.mxu0 %v571
        %734 = vmatprep.subr.bf16.mxu0 0
        %735 = vmatpush1.bf16.msra.mxu0 %v568
        %736 = vmatprep.subr.bf16.mxu0 0
        %737 = vmatpush1.bf16.msra.mxu0 %v565
        %738 = vmatprep.subr.bf16.mxu0 0
        %739 = vmatpush1.bf16.msra.mxu0 %v562
        %740 = vmatprep.subr.bf16.mxu0 0
        %741 = vmatpush1.bf16.msra.mxu0 %v559
        %742 = vmatprep.subr.bf16.mxu0 0
        %743 = vmatpush2.bf16.msra.mxu0 %v604
        %744 = vmatprep.subr.bf16.mxu0 0
        %745 = vmatpush2.bf16.msra.mxu0 %v601
        %746 = vmatprep.subr.bf16.mxu0 0
        %747 = vmatpush2.bf16.msra.mxu0 %v598
        %748 = vmatprep.subr.bf16.mxu0 0
        %749 = vmatpush2.bf16.msra.mxu0 %v595
        %750 = vmatprep.subr.bf16.mxu0 0
        %751 = vmatpush2.bf16.msra.mxu0 %v592
        %752 = vmatprep.subr.bf16.mxu0 0
        %753 = vmatpush2.bf16.msra.mxu0 %v589
        %754 = vmatprep.subr.bf16.mxu0 0
        %755 = vmatpush2.bf16.msra.mxu0 %v586
        %756 = vmatprep.subr.bf16.mxu0 0
        %757 = vmatpush2.bf16.msra.mxu0 %v583
        %758 = vmatprep.mubr.bf16.mxu0 %v382
        %759 = vmatmul.mubr.bf16.gmra.mxu0 %v381
        %v760 = vpop.f32.mrf.mxu0
        %v761 = vadd.f32 %v353, %v760
        %v762 = vpop.f32.mrf.mxu0
        %v763 = vpop.f32.mrf.mxu0
        %v764 = vadd.f32 %v353, %v763
        %v765 = vpop.f32.mrf.mxu0
        %766 = vmatprep.mubr.bf16.mxu0 %v384
        %767 = vmatmul.mubr.bf16.gmra.mxu0 %v383
        %v768 = vpop.f32.mrf.mxu0
        %v769 = vadd.f32 %v353, %v768
        %v770 = vpop.f32.mrf.mxu0
        %v771 = vpop.f32.mrf.mxu0
        %v772 = vadd.f32 %v353, %v771
        %v773 = vpop.f32.mrf.mxu0
        %774 = vmatprep.mubr.bf16.mxu0 %v386
        %775 = vmatmul.mubr.bf16.gmra.mxu0 %v385
        %v776 = vpop.f32.mrf.mxu0
        %v777 = vadd.f32 %v353, %v776
        %v778 = vpop.f32.mrf.mxu0
        %v779 = vpop.f32.mrf.mxu0
        %v780 = vadd.f32 %v353, %v779
        %v781 = vpop.f32.mrf.mxu0
        %782 = vmatprep.mubr.bf16.mxu0 %v388
        %783 = vmatmul.mubr.bf16.gmra.mxu0 %v387
        %v784 = vpop.f32.mrf.mxu0
        %v785 = vadd.f32 %v353, %v784
        %v786 = vpop.f32.mrf.mxu0
        %v787 = vpop.f32.mrf.mxu0
        %v788 = vadd.f32 %v353, %v787
        %v789 = vpop.f32.mrf.mxu0
        %790 = vdwg.mxu0
        %v791 = vpack.c.bf16 %v692, %v688
        %v792 = vpack.c.bf16 %v694, %v690
        %v793 = vpack.c.bf16 %v764, %v761
        %v794 = vpack.c.bf16 %v702, %v698
        %v795 = vpack.c.bf16 %v704, %v700
        %v796 = vpack.c.bf16 %v772, %v769
        %v797 = vpack.c.bf16 %v712, %v708
        %v798 = vpack.c.bf16 %v714, %v710
        %v799 = vpack.c.bf16 %v780, %v777
        %v800 = vpack.c.bf16 %v722, %v718
        %v801 = vpack.c.bf16 %v724, %v720
        %v802 = vpack.c.bf16 %v788, %v785
        %v815 = vunpack.c.l.b16 %v791
        %v816 = vunpack.c.l.b16 %v792
        %v817 = vunpack.c.l.b16 %v793
        %v818 = vunpack.c.h.b16 %v791
        %v819 = vunpack.c.h.b16 %v792
        %v820 = vunpack.c.h.b16 %v793
        %v821 = vunpack.c.l.b16 %v794
        %v822 = vunpack.c.l.b16 %v795
        %v823 = vunpack.c.l.b16 %v796
        %v824 = vunpack.c.h.b16 %v794
        %v825 = vunpack.c.h.b16 %v795
        %v826 = vunpack.c.h.b16 %v796
        %v827 = vunpack.c.l.b16 %v797
        %v828 = vunpack.c.l.b16 %v798
        %v829 = vunpack.c.l.b16 %v799
        %v830 = vunpack.c.h.b16 %v797
        %v831 = vunpack.c.h.b16 %v798
        %v832 = vunpack.c.h.b16 %v799
        %v833 = vunpack.c.l.b16 %v800
        %v834 = vunpack.c.l.b16 %v801
        %v835 = vunpack.c.l.b16 %v802
        %v836 = vunpack.c.h.b16 %v800
        %v837 = vunpack.c.h.b16 %v801
        %v838 = vunpack.c.h.b16 %v802
        %v839 = vpack.c.b16 %v816, %v815
        %v840 = vpack.c.b16 %v817, %v817
        %v841 = vpack.c.b16 %v819, %v818
        %v842 = vpack.c.b16 %v820, %v820
        %v843 = vpack.c.b16 %v822, %v821
        %v844 = vpack.c.b16 %v823, %v823
        %v845 = vpack.c.b16 %v825, %v824
        %v846 = vpack.c.b16 %v826, %v826
        %v847 = vpack.c.b16 %v828, %v827
        %v848 = vpack.c.b16 %v829, %v829
        %v849 = vpack.c.b16 %v831, %v830
        %v850 = vpack.c.b16 %v832, %v832
        %v851 = vpack.c.b16 %v834, %v833
        %v852 = vpack.c.b16 %v835, %v835
        %v853 = vpack.c.b16 %v837, %v836
        %v854 = vpack.c.b16 %v838, %v838
        %871 = vst [vmem:[%s261] sm:$0xff] %v839
        %872 = vst [vmem:[%s261 + $0x8] sm:$0xf] %v840
        %873 = vst [vmem:[%s261 + $0xc] sm:$0xff] %v841
        %874 = vst [vmem:[%s261 + $0x14] sm:$0xf] %v842
        %875 = vst [vmem:[%s261 + $0x18] sm:$0xff] %v843
        %876 = vst [vmem:[%s261 + $0x20] sm:$0xf] %v844
        %877 = vst [vmem:[%s261 + $0x24] sm:$0xff] %v845
        %878 = vst [vmem:[%s261 + $0x2c] sm:$0xf] %v846
        %879 = vst [vmem:[%s261 + $0x30] sm:$0xff] %v847
        %880 = vst [vmem:[%s261 + $0x38] sm:$0xf] %v848
        %881 = vst [vmem:[%s261 + $0x3c] sm:$0xff] %v849
        %882 = vst [vmem:[%s261 + $0x44] sm:$0xf] %v850
        %883 = vst [vmem:[%s261 + $0x48] sm:$0xff] %v851
        %884 = vst [vmem:[%s261 + $0x50] sm:$0xf] %v852
        %885 = vst [vmem:[%s261 + $0x54] sm:$0xff] %v853
        %886 = vst [vmem:[%s261 + $0x5c] sm:$0xf] %v854
        %s887 = sand.u32 %s121, 1
        %s888 = scalar_lea.sflag [#allocation4], %s887
        %s889 = sand.u32 %s121, 1
        %s890 = smul.addr %s889, 96
        %s891 = scalar_lea.vmem [#allocation8], %s890
        // Predicated region
        $region45: #{tpu_custom_call.1} parent=31 // pred_check
          %p892 = pneg %p131
        $region46: #{tpu_custom_call.1} parent=31 // pred_check_branch
          %894 = sbr.rel (%p892) target = $region48
        $region47: #{tpu_custom_call.1} parent=31 // pred_region
          %s895 = smul.u32 8, %s25
          %s896 = smul.u32 3, %s26
          %s898 = ssub.s32 1536, 1536
          %899 = vsyncadd %s888, %s898
          %s900 = smul.addr %s895, 6
          %s901 = sadd.s32 %s896, %s900
          %s902 = smul.addr %s901, 64
          %s903 = scalar_lea.hbm %s3, %s902
          %s904 = sshll.u32 %s891, 4
          %s905 = int_to_ptr.vmem [resolvable:$true] %s904
          %910 = dma.vmem_to_hbm [thread:$0]  %s905, 1536, %s903, %s888, 192, 384, 12
        $region48: #{tpu_custom_call.1} parent=31 // pred_fallthru
          _
      $region32: #{tpu_custom_call.1} parent=5 // pred_fallthru
        _
      %p911 = scmp.le.s32.totalorder 2, %s16
      // Predicated region
      $region49: #{tpu_custom_call.1} parent=5 // pred_check
        %p912 = pneg %p911
      $region50: #{tpu_custom_call.1} parent=5 // pred_check_branch
        %914 = sbr.rel (%p912) target = $region52
      $region51: #{tpu_custom_call.1} parent=5 // pred_region
        %s915 = ssub.s32 %s16, 2
        // Predicated region
        $region53: #{tpu_custom_call.1} parent=51 // pred_check
          %p916 = pneg %p137
        $region54: #{tpu_custom_call.1} parent=51 // pred_check_branch
          %918 = sbr.rel (%p916) target = $region56
        $region55: #{tpu_custom_call.1} parent=51 // pred_region
          %s919 = sand.u32 %s122, 1
          %s920 = scalar_lea.sflag [#allocation4], %s919
          %s921 = sand.u32 %s122, 1
          %s922 = smul.addr %s921, 96
          %s923 = scalar_lea.vmem [#allocation8], %s922
          %924 = dma.done %s920, 1536
        $region56: #{tpu_custom_call.1} parent=51 // pred_fallthru
          _
      $region52: #{tpu_custom_call.1} parent=5 // pred_fallthru
        _
    $region6: #{tpu_custom_call.1} parent=1 // loop_footer
      %s20 = sadd.s32 1, %s16
    $region7: #{tpu_custom_call.1} parent=1 // loop_footer_branch
      %15 = sbr.rel target = $region3
    $region8: #{tpu_custom_call.1} parent=1 // loop_exit
      _
    %925 = vsyncpa [#allocation3], 1
    %s926 = scalar_lea.sflag [#allocation3], 1
    %927 = vsyncpa %s926, 1
    %928 = vsyncpa [#allocation6], 1
    %s929 = scalar_lea.sflag [#allocation6], 1
    %930 = vsyncpa %s929, 1
    %931 = vsyncpa [#allocation4], 1
    %s932 = scalar_lea.sflag [#allocation4], 1
    %933 = vsyncpa %s932, 1

</llo_original>
